<compile_context>
chip_gen: v7x
topology: tpu7x:2x2x1
jax: 0.10.0
libtpu: 0.0.40
codegen_flags: <defaults>
</compile_context>

<pallas_src>
import jax
import jax.numpy as jnp
from jax.experimental import pallas as pl
from jax.experimental.pallas import tpu as pltpu


def _cdiv(a, b):
    return -(-a // b)


def _round_up(a, b):
    return _cdiv(a, b) * b


def _block_diag(mat, g):
    """Block-diagonal (g*A, g*A) matrix with `mat` (A, A) repeated on the diagonal."""
    a = mat.shape[0]
    eye = jnp.eye(g, dtype=mat.dtype)
    return (eye[:, None, :, None] * mat[None, :, None, :]).reshape(g * a, g * a)


def _vmem_capacity_bytes():
    """Generation-aware VMEM capacity (falls back to the v7x 64 MiB floor)."""
    try:
        info = pltpu.get_tpu_info()
        for name in ("vmem_capacity_bytes", "vmem_size_bytes", "vmem_bytes"):
            cap = getattr(info, name, None)
            if cap:
                return int(cap)
    except Exception:
        pass
    return 64 << 20


def _segmented_allreduce(x, seg, op):
    """Per-segment all-reduce along the lane axis via an XOR-butterfly of XLU rolls.

    x: (rows, L) with L a multiple of `seg` and `seg` a power of two.  After the call,
    every lane holds op-reduction over its own contiguous `seg`-wide lane segment.
    The partner selection is driven by a rolled lane-index iota, so it is independent of
    the roll direction convention.
    """
    L = x.shape[-1]
    lane = jax.lax.broadcasted_iota(jnp.int32, (1, L), 1)
    shift = 1
    while shift < seg:
        amt_a = (L - shift) % L
        amt_b = shift
        xa = pltpu.roll(x, amt_a, axis=1)
        xb = pltpu.roll(x, amt_b, axis=1)
        src_a = pltpu.roll(lane, amt_a, axis=1)        # source lane feeding xa at each slot
        want = lane ^ shift                            # butterfly partner (stays in-segment)
        partner = jnp.where(src_a == want, xa, xb)
        x = op(x, partner)
        shift *= 2
    return x


def _make_kernel(has_attn, seg_width, mm_dtype):
    def kernel(*refs):
        if has_attn:
            x_ref, a_ref, wt_ref, b_ref, o_ref = refs
        else:
            x_ref, wt_ref, b_ref, o_ref = refs

        x = x_ref[...]
        a = a_ref[...] if has_attn else x              # attn=None: reuse the single stream

        # Linear: logits = a @ W.T + b  (mm_dtype MXU operands, f32 accumulation).
        logits = jnp.dot(a.astype(mm_dtype), wt_ref[...],
                         preferred_element_type=jnp.float32)
        logits = logits + b_ref[...]

        if seg_width is not None:
            # Row-packed layout: per-A-segment max/sum on the XLU (no second matmul).
            # Per-segment max guarantees denom >= 1, so no underflow/NaN is possible.
            m = _segmented_allreduce(logits, seg_width, jnp.maximum)
            e = jnp.exp(logits - m)
            denom = _segmented_allreduce(e, seg_width, jnp.add)
        else:
            m = jnp.max(logits, axis=-1, keepdims=True)
            e = jnp.exp(logits - m)
            denom = jnp.sum(e, axis=-1, keepdims=True)

        p = e * pl.reciprocal(denom, approx=True)      # EUP vrcp (otherwise-idle slot)
        o_ref[...] = (x * p).astype(o_ref.dtype)

    return kernel


def _prepare_constants(weight, bias, matmul_dtype=None):
    """Precompute the kernel-resident weight/bias (hoisted out of the per-call path)."""
    weight = jnp.asarray(weight)
    bias = jnp.asarray(bias)
    A = weight.shape[0]
    mm_dtype = jnp.dtype(matmul_dtype) if matmul_dtype is not None else jnp.dtype(weight.dtype)

    wt = weight.T.astype(jnp.float32)                  # logits = a @ wt + b
    b32 = bias.astype(jnp.float32)

    if A < 128 and 128 % A == 0:
        # Row packing: G rows share one 128-lane group; block-diagonal Linear.
        G, GA, lane_pad = 128 // A, 128, False
        seg_width = A
        wt_big = _block_diag(wt, G)
        b_big = jnp.tile(b32, (G,)).reshape(1, GA)
    else:
        G = 1
        GA = _round_up(A, 128)
        lane_pad = GA != A
        seg_width = None
        if lane_pad:
            # Zero weight cols/rows + -1e30 bias on padded lanes: padded logits contribute
            # exp(.)=0 to the softmax and padded outputs are exactly 0 (sliced off by the
            # wrapper).  Keeps stores lane-dense (unmasked 128-wide vst).
            wt_big = jnp.zeros((GA, GA), jnp.float32).at[:A, :A].set(wt)
            b_big = jnp.full((GA,), -1e30, jnp.float32).at[:A].set(b32).reshape(1, GA)
        else:
            wt_big = wt
            b_big = b32.reshape(1, GA)

    return dict(A=A, G=G, GA=GA, lane_pad=lane_pad, seg_width=seg_width,
                wt_big=wt_big.astype(mm_dtype), b_big=b_big)


def _run_kernel(xm, am, wt_big, b_big, tm_eff, n_blocks, seg_width, mm_dtype,
                out_dtype, vmem_limit, buffering):
    GA = xm.shape[-1]
    has_attn = am is not None

    row_kwargs = {}
    if buffering is not None:
        # Optional deeper input buffering (e.g. 3 on v7x if profiling shows exposed DMA).
        row_kwargs["pipeline_mode"] = pl.Buffered(int(buffering))
    row_in = pl.BlockSpec((tm_eff, GA), lambda i: (i, 0), **row_kwargs)
    row_out = pl.BlockSpec((tm_eff, GA), lambda i: (i, 0))
    const_w = pl.BlockSpec((GA, GA), lambda i: (0, 0))     # resident weight
    const_b = pl.BlockSpec((1, GA), lambda i: (0, 0))      # resident bias

    in_specs = [row_in] + ([row_in] if has_attn else []) + [const_w, const_b]
    inputs = [xm] + ([am] if has_attn else []) + [wt_big, b_big]

    return pl.pallas_call(
        _make_kernel(has_attn, seg_width, mm_dtype),
        out_shape=jax.ShapeDtypeStruct((n_blocks * tm_eff, GA), out_dtype),
        grid_spec=pltpu.PrefetchScalarGridSpec(
            num_scalar_prefetch=0,
            grid=(n_blocks,),
            in_specs=in_specs,
            out_specs=row_out,
        ),
        compiler_params=pltpu.CompilerParams(
            dimension_semantics=("parallel",),    # shard the row loop across v7x's 2 TCs
            vmem_limit_bytes=vmem_limit,
        ),
    )(*inputs)


def _xla_tail(x, a, weight, bias, out_dtype):
    """Plain-XLA path for the (< one block, bounded-size) ragged tail."""
    src = x if a is None else a
    logits = jnp.dot(src.astype(jnp.float32), jnp.asarray(weight, jnp.float32).T)
    logits = logits + jnp.asarray(bias, jnp.float32)
    p = jax.nn.softmax(logits, axis=-1)
    return (x.astype(jnp.float32) * p).astype(out_dtype)


def _forward_impl(target, attn, weight, bias, consts, tm, buffering):
    orig_shape = target.shape
    A, G, GA = consts["A"], consts["G"], consts["GA"]
    lane_pad, seg_width = consts["lane_pad"], consts["seg_width"]
    wt_big, b_big = consts["wt_big"], consts["b_big"]
    mm_dtype = wt_big.dtype
    has_attn = attn is not None
    out_dtype = target.dtype

    x2 = target.reshape(-1, A)
    a2 = attn.reshape(-1, A) if has_attn else None
    M = x2.shape[0]

    # Lane padding only for lane-unfriendly A: one input copy buys unmasked 128-lane
    # stores (the biggest single measured lever for store-bound tails).
    if lane_pad:
        xp = jnp.pad(x2, ((0, 0), (0, GA - A)))
        ap = jnp.pad(a2, ((0, 0), (0, GA - A))) if has_attn else None
    else:
        xp, ap = x2, a2

    # Dtype-aware sublane granule for the streamed tiles (f32: 8, bf16: 16, 8-bit: 32).
    isz_x = jnp.dtype(xp.dtype).itemsize
    isz_a = jnp.dtype(ap.dtype).itemsize if has_attn else isz_x
    isz_o = jnp.dtype(out_dtype).itemsize
    granule = {4: 8, 2: 16, 1: 32}.get(min(isz_x, isz_a, isz_o), 8)

    # Row-tile choice: as large as allowed, but (a) capped so the "parallel" grid keeps
    # >= 2 blocks whenever there is enough work (v7x dual-TC), and (b) shrunk if the VMEM
    # estimate -- streamed blocks double-buffered + resident weight/bias + in-kernel f32
    # temporaries -- would not fit under the per-core capacity with ~25% headroom.
    Mp_all = max(1, _cdiv(M, G))
    cap = max(granule, _round_up(_cdiv(Mp_all, 2), granule))
    tm_eff = _round_up(max(granule, min(int(tm), cap)), granule)

    mm_isz = jnp.dtype(mm_dtype).itemsize

    def vmem_est(t):
        stream = 2 * t * GA * (isz_x + (isz_a if has_attn else 0) + isz_o)
        resident = 2 * GA * GA * mm_isz + 2 * GA * 4
        temps = 6 * t * GA * 4                     # logits/e/p/butterfly f32 temporaries
        return stream + resident + temps

    vmem_cap = _vmem_capacity_bytes()
    while tm_eff > granule and vmem_est(tm_eff) > int(0.75 * vmem_cap):
        tm_eff = max(granule, _round_up(tm_eff // 2, granule))
    vmem_limit = int(min(max(32 << 20, int(1.3 * vmem_est(tm_eff))), vmem_cap))

    rows_per_block = tm_eff * G
    n_full = M // rows_per_block

    def unpack(out_k, n_packed_rows):
        if G > 1:
            return out_k.reshape(n_packed_rows * G, A)   # contiguous, free
        return out_k[:, :A] if lane_pad else out_k

    if n_full >= 1:
        # Main body: whole blocks only -> no row padding / no full-array copy (the
        # contiguous reshape to (packed_rows, GA) is layout-preserving).
        M_main = n_full * rows_per_block
        xm = xp[:M_main].reshape(n_full * tm_eff, GA)
        am = ap[:M_main].reshape(n_full * tm_eff, GA) if has_attn else None
        out_main = _run_kernel(xm, am, wt_big, b_big, tm_eff, n_full, seg_width,
                               mm_dtype, out_dtype, vmem_limit, buffering)
        out2 = unpack(out_main, n_full * tm_eff)
        if M_main < M:
            # Ragged tail (< one block, bounded absolute size): plain XLA ops instead of
            # padding and re-streaming the entire input through the kernel.
            tail = _xla_tail(x2[M_main:], a2[M_main:] if has_attn else None,
                             weight, bias, out_dtype)
            out2 = jnp.concatenate([out2, tail], axis=0)
    else:
        # Tiny input (< one block): pad the (small) row count up to a single tile.
        M_pad = rows_per_block
        xm = jnp.pad(xp, ((0, M_pad - M), (0, 0))).reshape(tm_eff, GA)
        am = (jnp.pad(ap, ((0, M_pad - M), (0, 0))).reshape(tm_eff, GA)
              if has_attn else None)
        out_k = _run_kernel(xm, am, wt_big, b_big, tm_eff, 1, seg_width,
                            mm_dtype, out_dtype, vmem_limit, buffering)
        out2 = unpack(out_k, tm_eff)[:M]

    return out2.reshape(orig_shape)


def make_attention_net(weight, bias, *, matmul_dtype=None, tm=2048, buffering=None):
    """Build a forward(target, attn=None) closure with kernel constants hoisted once.

    matmul_dtype : dtype of the MXU operands (weight + cast activations).  Defaults to
        weight.dtype; pass jnp.bfloat16 on v5e for single-pass MXU if a small accuracy
        drop vs the f32 reference is acceptable.
    tm           : packed-row tile (rows of 128 lanes) per grid step.
    buffering    : optional pl.Buffered depth for the streamed inputs (e.g. 3 on v7x if
        profiling shows exposed DMA at step boundaries).
    """
    weight = jnp.asarray(weight)
    bias = jnp.asarray(bias)
    consts = _prepare_constants(weight, bias, matmul_dtype)

    def forward(target, attn=None):
        return _forward_impl(target, attn, weight, bias, consts, tm, buffering)

    return forward


def attention_net_forward(target, weight, bias, attn=None, *,
                          tm=2048, matmul_dtype=None, buffering=None):
    """AttentionNet forward: target * softmax(Linear(attn or target), dim=-1)."""
    weight = jnp.asarray(weight)
    bias = jnp.asarray(bias)
    consts = _prepare_constants(weight, bias, matmul_dtype)
    return _forward_impl(target, attn, weight, bias, consts, tm, buffering)


def _reference(target, weight, bias, attn=None):
    a = target if attn is None else attn
    logits = a.astype(jnp.float32) @ weight.T.astype(jnp.float32) + bias.astype(jnp.float32)
    return (target.astype(jnp.float32) * jax.nn.softmax(logits, axis=-1)).astype(target.dtype)


if __name__ == "__main__":
    key = jax.random.PRNGKey(0)
    k_x, k_a, k_w, k_b, k_y, k_w2, k_b2, k_z = jax.random.split(key, 8)

    attention_size = 32            # A
    batch, seq = 2, 8              # target: (2, 8, 32)

    target = jax.random.normal(k_x, (batch, seq, attention_size), dtype=jnp.float32)
    attn_in = jax.random.normal(k_a, (batch, seq, attention_size), dtype=jnp.float32)

    # PyTorch-style Linear init (uniform(-1/sqrt(A), 1/sqrt(A))), PyTorch weight layout.
    bound = 1.0 / (attention_size ** 0.5)
    W = jax.random.uniform(k_w, (attention_size, attention_size),
                           minval=-bound, maxval=bound, dtype=jnp.float32)
    b = jax.random.uniform(k_b, (attention_size,),
                           minval=-bound, maxval=bound, dtype=jnp.float32)

    net = make_attention_net(W, b)                        # constants hoisted once
    out1 = net(target)                                    # attn=None (single stream)
    out2 = net(target, attn=attn_in)                      # explicit attn
    target3 = jax.random.normal(k_y, (3, 5, attention_size), dtype=jnp.float32)
    out3 = net(target3)                                   # ragged row count

    # Lane-unfriendly A (48): exercises the lane-padded path + main/tail split.
    A2 = 48
    bound2 = 1.0 / (A2 ** 0.5)
    W2 = jax.random.uniform(k_w2, (A2, A2), minval=-bound2, maxval=bound2, dtype=jnp.float32)
    b2 = jax.random.uniform(k_b2, (A2,), minval=-bound2, maxval=bound2, dtype=jnp.float32)
    target4 = jax.random.normal(k_z, (2, 7, A2), dtype=jnp.float32)
    out4 = attention_net_forward(target4, W2, b2)

    jax.block_until_ready((out1, out2, out3, out4))

    ref1 = _reference(target, W, b)
    ref2 = _reference(target, W, b, attn=attn_in)
    ref3 = _reference(target3, W, b)
    ref4 = _reference(target4, W2, b2)
    assert jnp.allclose(out1, ref1, atol=5e-3, rtol=5e-3), "attn=None path mismatch"
    assert jnp.allclose(out2, ref2, atol=5e-3, rtol=5e-3), "explicit attn path mismatch"
    assert jnp.allclose(out3, ref3, atol=5e-3, rtol=5e-3), "ragged-M path mismatch"
    assert jnp.allclose(out4, ref4, atol=5e-3, rtol=5e-3), "lane-padded A path mismatch"

    print("KERNEL_OK")
</pallas_src>

<mosaic_0001>
module attributes {stable_mosaic.version = 11 : i64} {
  func.func @kernel(%arg0: i32, %arg1: memref<8x128xf32, #tpu.memory_space<vmem>>, %arg2: memref<128x128xf32, #tpu.memory_space<vmem>>, %arg3: memref<1x128xf32, #tpu.memory_space<vmem>>, %arg4: memref<8x128xf32, #tpu.memory_space<vmem>>) attributes {dimension_semantics = [#tpu.dimension_semantics<parallel>], iteration_bounds = array<i64: 1>, scalar_prefetch = 0 : i64, scratch_operands = 0 : i64, tpu.core_type = #tpu.core_type<tc>, window_params = [{transform_indices = @transform_0, window_bounds = array<i64: 8, 128>}, {pipeline_mode = #tpu.pipeline_mode<synchronous>, transform_indices = @transform_1, window_bounds = array<i64: 128, 128>}, {pipeline_mode = #tpu.pipeline_mode<synchronous>, transform_indices = @transform_2, window_bounds = array<i64: 1, 128>}, {transform_indices = @transform_3, window_bounds = array<i64: 8, 128>}]} {
    %c0 = arith.constant 0 : index
    %c0_0 = arith.constant 0 : index
    %0 = vector.load %arg1[%c0, %c0_0] : memref<8x128xf32, #tpu.memory_space<vmem>>, vector<8x128xf32>
    %c0_1 = arith.constant 0 : index
    %c0_2 = arith.constant 0 : index
    %1 = vector.load %arg2[%c0_1, %c0_2] : memref<128x128xf32, #tpu.memory_space<vmem>>, vector<128x128xf32>
    %cst = arith.constant dense<0.000000e+00> : vector<8x128xf32>
    %2 = tpu.matmul %0, %1, %cst {dimension_numbers = #tpu.dot_dimension_numbers<[1], [0], [0], [1], [0, 0, 1, 1], [], []>} : vector<8x128xf32>, vector<128x128xf32>, vector<8x128xf32> -> vector<8x128xf32>
    %c0_3 = arith.constant 0 : index
    %c0_4 = arith.constant 0 : index
    %3 = vector.load %arg3[%c0_3, %c0_4] : memref<1x128xf32, #tpu.memory_space<vmem>>, vector<1x128xf32>
    %4 = vector.broadcast %3 : vector<1x128xf32> to vector<8x128xf32>
    %5 = arith.addf %2, %4 : vector<8x128xf32>
    %6 = tpu.iota {dimensions = array<i32: 1>} : vector<1x128xi32>
    %c127_i32 = arith.constant 127 : i32
    %7 = tpu.dynamic_rotate %5 by %c127_i32 dim 1 : vector<8x128xf32>, i32 -> vector<8x128xf32>
    %c1_i32 = arith.constant 1 : i32
    %8 = tpu.dynamic_rotate %5 by %c1_i32 dim 1 : vector<8x128xf32>, i32 -> vector<8x128xf32>
    %c127_i32_5 = arith.constant 127 : i32
    %9 = tpu.dynamic_rotate %6 by %c127_i32_5 dim 1 : vector<1x128xi32>, i32 -> vector<1x128xi32>
    %c1_i32_6 = arith.constant 1 : i32
    %10 = vector.broadcast %c1_i32_6 : i32 to vector<1x128xi32>
    %11 = arith.xori %6, %10 : vector<1x128xi32>
    %12 = arith.cmpi eq, %9, %11 : vector<1x128xi32>
    %13 = vector.shape_cast %12 : vector<1x128xi1> to vector<1x128xi1>
    %14 = vector.broadcast %13 : vector<1x128xi1> to vector<8x128xi1>
    %15 = arith.select %14, %7, %8 : vector<8x128xi1>, vector<8x128xf32>
    %16 = arith.maximumf %5, %15 : vector<8x128xf32>
    %c126_i32 = arith.constant 126 : i32
    %17 = tpu.dynamic_rotate %16 by %c126_i32 dim 1 : vector<8x128xf32>, i32 -> vector<8x128xf32>
    %c2_i32 = arith.constant 2 : i32
    %18 = tpu.dynamic_rotate %16 by %c2_i32 dim 1 : vector<8x128xf32>, i32 -> vector<8x128xf32>
    %c126_i32_7 = arith.constant 126 : i32
    %19 = tpu.dynamic_rotate %6 by %c126_i32_7 dim 1 : vector<1x128xi32>, i32 -> vector<1x128xi32>
    %c2_i32_8 = arith.constant 2 : i32
    %20 = vector.broadcast %c2_i32_8 : i32 to vector<1x128xi32>
    %21 = arith.xori %6, %20 : vector<1x128xi32>
    %22 = arith.cmpi eq, %19, %21 : vector<1x128xi32>
    %23 = vector.shape_cast %22 : vector<1x128xi1> to vector<1x128xi1>
    %24 = vector.broadcast %23 : vector<1x128xi1> to vector<8x128xi1>
    %25 = arith.select %24, %17, %18 : vector<8x128xi1>, vector<8x128xf32>
    %26 = arith.maximumf %16, %25 : vector<8x128xf32>
    %c124_i32 = arith.constant 124 : i32
    %27 = tpu.dynamic_rotate %26 by %c124_i32 dim 1 : vector<8x128xf32>, i32 -> vector<8x128xf32>
    %c4_i32 = arith.constant 4 : i32
    %28 = tpu.dynamic_rotate %26 by %c4_i32 dim 1 : vector<8x128xf32>, i32 -> vector<8x128xf32>
    %c124_i32_9 = arith.constant 124 : i32
    %29 = tpu.dynamic_rotate %6 by %c124_i32_9 dim 1 : vector<1x128xi32>, i32 -> vector<1x128xi32>
    %c4_i32_10 = arith.constant 4 : i32
    %30 = vector.broadcast %c4_i32_10 : i32 to vector<1x128xi32>
    %31 = arith.xori %6, %30 : vector<1x128xi32>
    %32 = arith.cmpi eq, %29, %31 : vector<1x128xi32>
    %33 = vector.shape_cast %32 : vector<1x128xi1> to vector<1x128xi1>
    %34 = vector.broadcast %33 : vector<1x128xi1> to vector<8x128xi1>
    %35 = arith.select %34, %27, %28 : vector<8x128xi1>, vector<8x128xf32>
    %36 = arith.maximumf %26, %35 : vector<8x128xf32>
    %c120_i32 = arith.constant 120 : i32
    %37 = tpu.dynamic_rotate %36 by %c120_i32 dim 1 : vector<8x128xf32>, i32 -> vector<8x128xf32>
    %c8_i32 = arith.constant 8 : i32
    %38 = tpu.dynamic_rotate %36 by %c8_i32 dim 1 : vector<8x128xf32>, i32 -> vector<8x128xf32>
    %c120_i32_11 = arith.constant 120 : i32
    %39 = tpu.dynamic_rotate %6 by %c120_i32_11 dim 1 : vector<1x128xi32>, i32 -> vector<1x128xi32>
    %c8_i32_12 = arith.constant 8 : i32
    %40 = vector.broadcast %c8_i32_12 : i32 to vector<1x128xi32>
    %41 = arith.xori %6, %40 : vector<1x128xi32>
    %42 = arith.cmpi eq, %39, %41 : vector<1x128xi32>
    %43 = vector.shape_cast %42 : vector<1x128xi1> to vector<1x128xi1>
    %44 = vector.broadcast %43 : vector<1x128xi1> to vector<8x128xi1>
    %45 = arith.select %44, %37, %38 : vector<8x128xi1>, vector<8x128xf32>
    %46 = arith.maximumf %36, %45 : vector<8x128xf32>
    %c112_i32 = arith.constant 112 : i32
    %47 = tpu.dynamic_rotate %46 by %c112_i32 dim 1 : vector<8x128xf32>, i32 -> vector<8x128xf32>
    %c16_i32 = arith.constant 16 : i32
    %48 = tpu.dynamic_rotate %46 by %c16_i32 dim 1 : vector<8x128xf32>, i32 -> vector<8x128xf32>
    %c112_i32_13 = arith.constant 112 : i32
    %49 = tpu.dynamic_rotate %6 by %c112_i32_13 dim 1 : vector<1x128xi32>, i32 -> vector<1x128xi32>
    %c16_i32_14 = arith.constant 16 : i32
    %50 = vector.broadcast %c16_i32_14 : i32 to vector<1x128xi32>
    %51 = arith.xori %6, %50 : vector<1x128xi32>
    %52 = arith.cmpi eq, %49, %51 : vector<1x128xi32>
    %53 = vector.shape_cast %52 : vector<1x128xi1> to vector<1x128xi1>
    %54 = vector.broadcast %53 : vector<1x128xi1> to vector<8x128xi1>
    %55 = arith.select %54, %47, %48 : vector<8x128xi1>, vector<8x128xf32>
    %56 = arith.maximumf %46, %55 : vector<8x128xf32>
    %57 = arith.subf %5, %56 : vector<8x128xf32>
    %58 = math.exp %57 : vector<8x128xf32>
    %59 = tpu.iota {dimensions = array<i32: 1>} : vector<1x128xi32>
    %c127_i32_15 = arith.constant 127 : i32
    %60 = tpu.dynamic_rotate %58 by %c127_i32_15 dim 1 : vector<8x128xf32>, i32 -> vector<8x128xf32>
    %c1_i32_16 = arith.constant 1 : i32
    %61 = tpu.dynamic_rotate %58 by %c1_i32_16 dim 1 : vector<8x128xf32>, i32 -> vector<8x128xf32>
    %c127_i32_17 = arith.constant 127 : i32
    %62 = tpu.dynamic_rotate %59 by %c127_i32_17 dim 1 : vector<1x128xi32>, i32 -> vector<1x128xi32>
    %c1_i32_18 = arith.constant 1 : i32
    %63 = vector.broadcast %c1_i32_18 : i32 to vector<1x128xi32>
    %64 = arith.xori %59, %63 : vector<1x128xi32>
    %65 = arith.cmpi eq, %62, %64 : vector<1x128xi32>
    %66 = vector.shape_cast %65 : vector<1x128xi1> to vector<1x128xi1>
    %67 = vector.broadcast %66 : vector<1x128xi1> to vector<8x128xi1>
    %68 = arith.select %67, %60, %61 : vector<8x128xi1>, vector<8x128xf32>
    %69 = arith.addf %58, %68 : vector<8x128xf32>
    %c126_i32_19 = arith.constant 126 : i32
    %70 = tpu.dynamic_rotate %69 by %c126_i32_19 dim 1 : vector<8x128xf32>, i32 -> vector<8x128xf32>
    %c2_i32_20 = arith.constant 2 : i32
    %71 = tpu.dynamic_rotate %69 by %c2_i32_20 dim 1 : vector<8x128xf32>, i32 -> vector<8x128xf32>
    %c126_i32_21 = arith.constant 126 : i32
    %72 = tpu.dynamic_rotate %59 by %c126_i32_21 dim 1 : vector<1x128xi32>, i32 -> vector<1x128xi32>
    %c2_i32_22 = arith.constant 2 : i32
    %73 = vector.broadcast %c2_i32_22 : i32 to vector<1x128xi32>
    %74 = arith.xori %59, %73 : vector<1x128xi32>
    %75 = arith.cmpi eq, %72, %74 : vector<1x128xi32>
    %76 = vector.shape_cast %75 : vector<1x128xi1> to vector<1x128xi1>
    %77 = vector.broadcast %76 : vector<1x128xi1> to vector<8x128xi1>
    %78 = arith.select %77, %70, %71 : vector<8x128xi1>, vector<8x128xf32>
    %79 = arith.addf %69, %78 : vector<8x128xf32>
    %c124_i32_23 = arith.constant 124 : i32
    %80 = tpu.dynamic_rotate %79 by %c124_i32_23 dim 1 : vector<8x128xf32>, i32 -> vector<8x128xf32>
    %c4_i32_24 = arith.constant 4 : i32
    %81 = tpu.dynamic_rotate %79 by %c4_i32_24 dim 1 : vector<8x128xf32>, i32 -> vector<8x128xf32>
    %c124_i32_25 = arith.constant 124 : i32
    %82 = tpu.dynamic_rotate %59 by %c124_i32_25 dim 1 : vector<1x128xi32>, i32 -> vector<1x128xi32>
    %c4_i32_26 = arith.constant 4 : i32
    %83 = vector.broadcast %c4_i32_26 : i32 to vector<1x128xi32>
    %84 = arith.xori %59, %83 : vector<1x128xi32>
    %85 = arith.cmpi eq, %82, %84 : vector<1x128xi32>
    %86 = vector.shape_cast %85 : vector<1x128xi1> to vector<1x128xi1>
    %87 = vector.broadcast %86 : vector<1x128xi1> to vector<8x128xi1>
    %88 = arith.select %87, %80, %81 : vector<8x128xi1>, vector<8x128xf32>
    %89 = arith.addf %79, %88 : vector<8x128xf32>
    %c120_i32_27 = arith.constant 120 : i32
    %90 = tpu.dynamic_rotate %89 by %c120_i32_27 dim 1 : vector<8x128xf32>, i32 -> vector<8x128xf32>
    %c8_i32_28 = arith.constant 8 : i32
    %91 = tpu.dynamic_rotate %89 by %c8_i32_28 dim 1 : vector<8x128xf32>, i32 -> vector<8x128xf32>
    %c120_i32_29 = arith.constant 120 : i32
    %92 = tpu.dynamic_rotate %59 by %c120_i32_29 dim 1 : vector<1x128xi32>, i32 -> vector<1x128xi32>
    %c8_i32_30 = arith.constant 8 : i32
    %93 = vector.broadcast %c8_i32_30 : i32 to vector<1x128xi32>
    %94 = arith.xori %59, %93 : vector<1x128xi32>
    %95 = arith.cmpi eq, %92, %94 : vector<1x128xi32>
    %96 = vector.shape_cast %95 : vector<1x128xi1> to vector<1x128xi1>
    %97 = vector.broadcast %96 : vector<1x128xi1> to vector<8x128xi1>
    %98 = arith.select %97, %90, %91 : vector<8x128xi1>, vector<8x128xf32>
    %99 = arith.addf %89, %98 : vector<8x128xf32>
    %c112_i32_31 = arith.constant 112 : i32
    %100 = tpu.dynamic_rotate %99 by %c112_i32_31 dim 1 : vector<8x128xf32>, i32 -> vector<8x128xf32>
    %c16_i32_32 = arith.constant 16 : i32
    %101 = tpu.dynamic_rotate %99 by %c16_i32_32 dim 1 : vector<8x128xf32>, i32 -> vector<8x128xf32>
    %c112_i32_33 = arith.constant 112 : i32
    %102 = tpu.dynamic_rotate %59 by %c112_i32_33 dim 1 : vector<1x128xi32>, i32 -> vector<1x128xi32>
    %c16_i32_34 = arith.constant 16 : i32
    %103 = vector.broadcast %c16_i32_34 : i32 to vector<1x128xi32>
    %104 = arith.xori %59, %103 : vector<1x128xi32>
    %105 = arith.cmpi eq, %102, %104 : vector<1x128xi32>
    %106 = vector.shape_cast %105 : vector<1x128xi1> to vector<1x128xi1>
    %107 = vector.broadcast %106 : vector<1x128xi1> to vector<8x128xi1>
    %108 = arith.select %107, %100, %101 : vector<8x128xi1>, vector<8x128xf32>
    %109 = arith.addf %99, %108 : vector<8x128xf32>
    %110 = tpu.reciprocal %109 {approx = true} : vector<8x128xf32> -> vector<8x128xf32>
    %111 = arith.mulf %58, %110 : vector<8x128xf32>
    %112 = arith.mulf %0, %111 : vector<8x128xf32>
    %c0_35 = arith.constant 0 : index
    %c0_36 = arith.constant 0 : index
    %113 = vector.load %arg4[%c0_35, %c0_36] : memref<8x128xf32, #tpu.memory_space<vmem>>, vector<8x128xf32>
    tpu.vector_store %arg4[%c0_35, %c0_36], %112 {strides = array<i32>} : memref<8x128xf32, #tpu.memory_space<vmem>>, vector<8x128xf32>,
    return
  }
  func.func @transform_0(%arg0: i32) -> (i32, i32) {
    %c0_i32 = arith.constant 0 : i32
    %c0_i32_0 = arith.constant 0 : i32
    return %arg0, %c0_i32 : i32, i32
  }
  func.func @transform_1(%arg0: i32) -> (i32, i32) {
    %c0_i32 = arith.constant 0 : i32
    %c0_i32_0 = arith.constant 0 : i32
    %c0_i32_1 = arith.constant 0 : i32
    return %c0_i32, %c0_i32_0 : i32, i32
  }
  func.func @transform_2(%arg0: i32) -> (i32, i32) {
    %c0_i32 = arith.constant 0 : i32
    %c0_i32_0 = arith.constant 0 : i32
    %c0_i32_1 = arith.constant 0 : i32
    return %c0_i32, %c0_i32_0 : i32, i32
  }
  func.func @transform_3(%arg0: i32) -> (i32, i32) {
    %c0_i32 = arith.constant 0 : i32
    %c0_i32_0 = arith.constant 0 : i32
    return %arg0, %c0_i32 : i32, i32
  }
}

</mosaic_0001>

<llo_original>
// kernel: tpu_custom_call.1
$region0: #{tpu_custom_call.1}
  #allocation0 [shape = 'u32[]', space=smem, size = 0x4, offset = 0x4, fixed_abs, tag = 'smem constant byte address 0x4 - core index']
  #allocation1 [shape = 'u32[144,128]{1,0:T(1,128)}', space=vmem, size = 0x12000, scoped, tag = 'internal scratch']
  %s0 = inlined_call_operand.hbm [shape: f32[8,128], index: 0, kind: input, shape index: {}]
  %s1 = inlined_call_operand.hbm [shape: f32[128,128], index: 1, kind: input, shape index: {}]
  %s2 = inlined_call_operand.vmem [shape: f32[1,128], index: 2, kind: input, shape index: {}]
  %s3 = inlined_call_operand.hbm [shape: f32[8,128], index: 3, kind: output, shape index: {}]
  %s4 = sld [smem:[#allocation0]]
  $region30: #{tpu_custom_call.1} parent=0
    _
  %s6 = ssub.s32 1, %s4
  %s7 = scalar_select 0, %s6, %s4
  $region1: #{tpu_custom_call.1} parent=0
    #allocation2 [shape = 'u8[4096]{0}', space=vmem, size = 0x1000, scoped, tag = 'input window, operand 0, single buffered']
    #allocation3 [shape = 's32[1]{0}', space=sflag, size = 0x4, scoped, tag = 'scoped memory for tpu_custom_call.1']
    #allocation4 [shape = 's32[1]{0}', space=sflag, size = 0x4, scoped, tag = 'scoped memory for tpu_custom_call.1']
    #allocation5 [shape = 'u8[65536]{0}', space=vmem, size = 0x10000, scoped, tag = 'input window, operand 1, single buffered']
    #allocation6 [shape = 's32[1]{0}', space=sflag, size = 0x4, scoped, tag = 'scoped memory for tpu_custom_call.1']
    #allocation7 [shape = 'u8[4096]{0}', space=vmem, size = 0x1000, scoped, tag = 'output window, operand 0, single buffered']
    %8 = vsyncpa [#allocation3], 0
    %9 = vsyncpa [#allocation6], 0
    %10 = vsyncpa [#allocation4], 0
    // Predicated region
    $region2: #{tpu_custom_call.1} parent=1 // pred_check
      _
    $region3: #{tpu_custom_call.1} parent=1 // pred_check_branch
      %12 = sbr.rel (0) target = $region5
    $region4: #{tpu_custom_call.1} parent=1 // pred_region
      %s14 = ssub.s32 128, 128
      %15 = vsyncadd [#allocation3], %s14
      %s17 = sshll.u32 [#allocation2], 4
      %s18 = int_to_ptr.vmem [resolvable:$true] %s17
      %20 = dma.hbm_to_vmem [thread:$0]  %s0, 128, %s18, [#allocation3]
    $region5: #{tpu_custom_call.1} parent=1 // pred_fallthru
      _
    // Predicated region
    $region6: #{tpu_custom_call.1} parent=1 // pred_check
      _
    $region7: #{tpu_custom_call.1} parent=1 // pred_check_branch
      %22 = sbr.rel (0) target = $region9
    $region8: #{tpu_custom_call.1} parent=1 // pred_region
      %s24 = ssub.s32 2048, 2048
      %25 = vsyncadd [#allocation6], %s24
      %s26 = sshll.u32 [#allocation5], 4
      %s27 = int_to_ptr.vmem [resolvable:$true] %s26
      %32 = dma.hbm_to_vmem [thread:$0]  %s1, 2048, %s27, [#allocation6], 128, 128, 8
    $region9: #{tpu_custom_call.1} parent=1 // pred_fallthru
      _
    // Predicated region
    $region10: #{tpu_custom_call.1} parent=1 // pred_check
      _
    $region11: #{tpu_custom_call.1} parent=1 // pred_check_branch
      %34 = sbr.rel (0) target = $region13
    $region12: #{tpu_custom_call.1} parent=1 // pred_region
      _
    $region13: #{tpu_custom_call.1} parent=1 // pred_fallthru
      _
    // Predicated region
    $region14: #{tpu_custom_call.1} parent=1 // pred_check
      _
    $region15: #{tpu_custom_call.1} parent=1 // pred_check_branch
      %36 = sbr.rel (0) target = $region17
    $region16: #{tpu_custom_call.1} parent=1 // pred_region
      %37 = dma.done [#allocation3], 128
    $region17: #{tpu_custom_call.1} parent=1 // pred_fallthru
      _
    // Predicated region
    $region18: #{tpu_custom_call.1} parent=1 // pred_check
      _
    $region19: #{tpu_custom_call.1} parent=1 // pred_check_branch
      %39 = sbr.rel (0) target = $region21
    $region20: #{tpu_custom_call.1} parent=1 // pred_region
      %40 = dma.done [#allocation6], 2048
    $region21: #{tpu_custom_call.1} parent=1 // pred_fallthru
      _
    %v41 = vld [vmem:[#allocation2] sm:$0xff]
    %v42 = vld [vmem:[#allocation5] sm:$0xff]
    %v43 = vld [vmem:[#allocation5 + $0x8] sm:$0xff]
    %v44 = vld [vmem:[#allocation5 + $0x10] sm:$0xff]
    %v45 = vld [vmem:[#allocation5 + $0x18] sm:$0xff]
    %v46 = vld [vmem:[#allocation5 + $0x20] sm:$0xff]
    %v47 = vld [vmem:[#allocation5 + $0x28] sm:$0xff]
    %v48 = vld [vmem:[#allocation5 + $0x30] sm:$0xff]
    %v49 = vld [vmem:[#allocation5 + $0x38] sm:$0xff]
    %v50 = vld [vmem:[#allocation5 + $0x40] sm:$0xff]
    %v51 = vld [vmem:[#allocation5 + $0x48] sm:$0xff]
    %v52 = vld [vmem:[#allocation5 + $0x50] sm:$0xff]
    %v53 = vld [vmem:[#allocation5 + $0x58] sm:$0xff]
    %v54 = vld [vmem:[#allocation5 + $0x60] sm:$0xff]
    %v55 = vld [vmem:[#allocation5 + $0x68] sm:$0xff]
    %v56 = vld [vmem:[#allocation5 + $0x70] sm:$0xff]
    %v57 = vld [vmem:[#allocation5 + $0x78] sm:$0xff]
    %v58 = vld [vmem:[%s2] sm:$0x1]
    %v60 = vlaneseq
    %v61 = vshrl.u32 %v60, 7
    %v62 = vsub.s32 0, %v61
    %v63 = vrot.slane %v58, %v62
    %65 = vmatprep.subr.mxu0 0.0
    %66 = vmatpush1.msra.mxu0 %v42
    %67 = vmatprep.subr.mxu0 0.0
    %68 = vmatpush1.msra.mxu0 %v43
    %69 = vmatprep.subr.mxu0 0.0
    %70 = vmatpush1.msra.mxu0 %v44
    %71 = vmatprep.subr.mxu0 0.0
    %72 = vmatpush1.msra.mxu0 %v45
    %73 = vmatprep.subr.mxu0 0.0
    %74 = vmatpush1.msra.mxu0 %v46
    %75 = vmatprep.subr.mxu0 0.0
    %76 = vmatpush1.msra.mxu0 %v47
    %77 = vmatprep.subr.mxu0 0.0
    %78 = vmatpush1.msra.mxu0 %v48
    %79 = vmatprep.subr.mxu0 0.0
    %80 = vmatpush1.msra.mxu0 %v49
    %81 = vmatprep.subr.mxu0 0.0
    %82 = vmatpush1.msra.mxu0 %v50
    %83 = vmatprep.subr.mxu0 0.0
    %84 = vmatpush1.msra.mxu0 %v51
    %85 = vmatprep.subr.mxu0 0.0
    %86 = vmatpush1.msra.mxu0 %v52
    %87 = vmatprep.subr.mxu0 0.0
    %88 = vmatpush1.msra.mxu0 %v53
    %89 = vmatprep.subr.mxu0 0.0
    %90 = vmatpush1.msra.mxu0 %v54
    %91 = vmatprep.subr.mxu0 0.0
    %92 = vmatpush1.msra.mxu0 %v55
    %93 = vmatprep.subr.mxu0 0.0
    %94 = vmatpush1.msra.mxu0 %v56
    %95 = vmatprep.subr.mxu0 0.0
    %96 = vmatpush1.msra.mxu0 %v57
    %97 = vmatprep.subr.mxu0 0.0
    %98 = vmatpush1.msra.mxu0 0.0
    %99 = vmatprep.subr.mxu0 0.0
    %100 = vmatpush1.msra.mxu0 0.0
    %101 = vmatprep.subr.mxu0 0.0
    %102 = vmatpush1.msra.mxu0 0.0
    %103 = vmatprep.subr.mxu0 0.0
    %104 = vmatpush1.msra.mxu0 0.0
    %105 = vmatprep.subr.mxu0 0.0
    %106 = vmatpush1.msra.mxu0 0.0
    %107 = vmatprep.subr.mxu0 0.0
    %108 = vmatpush1.msra.mxu0 0.0
    %109 = vmatprep.subr.mxu0 0.0
    %110 = vmatpush1.msra.mxu0 0.0
    %111 = vmatprep.subr.mxu0 0.0
    %112 = vmatpush1.msra.mxu0 0.0
    %113 = vmatprep.subr.mxu0 0.0
    %114 = vmatpush1.msra.mxu0 0.0
    %115 = vmatprep.subr.mxu0 0.0
    %116 = vmatpush1.msra.mxu0 0.0
    %117 = vmatprep.subr.mxu0 0.0
    %118 = vmatpush1.msra.mxu0 0.0
    %119 = vmatprep.subr.mxu0 0.0
    %120 = vmatpush1.msra.mxu0 0.0
    %121 = vmatprep.subr.mxu0 0.0
    %122 = vmatpush1.msra.mxu0 0.0
    %123 = vmatprep.subr.mxu0 0.0
    %124 = vmatpush1.msra.mxu0 0.0
    %125 = vmatprep.subr.mxu0 0.0
    %126 = vmatpush1.msra.mxu0 0.0
    %127 = vmatprep.subr.mxu0 0.0
    %128 = vmatpush1.msra.mxu0 0.0
    %129 = vmatprep.mubr.f32.mxu0 0.0
    %130 = vmatmul.mubr.f32.gmra.mrb[0].mxu0 %v41
    %v131 = vpop.f32.mrb[0].mxu0
    %v132 = vadd.f32 %v63, %v131
    %v133 = vpop.f32.mrb[0].mxu0
    %134 = vdwg.mxu0
    %v135 = vlaneseq
    %v136 = vand.u32 %v135, 127
    %137 = vrot.lane.b32.xlu0 %v132, 127
    %v138 = vpop.permute.xlu0 %137
    %139 = vrot.lane.b32.xlu0 %v132, 1
    %v140 = vpop.permute.xlu0 %139
    %141 = vrot.lane.b32.xlu0 %v136, 127
    %v142 = vpop.permute.xlu0 %141
    %v143 = vxor.u32 %v136, 1
    %vm144 = vcmp.eq.s32.totalorder %v142, %v143
    %v145 = vsel %vm144, 1, 0
    %v146 = vlaneseq
    %v147 = vshrl.u32 %v146, 7
    %v148 = vsub.s32 0, %v147
    %v149 = vrot.slane %v145, %v148
    %vm150 = vcmp.eq.s32.totalorder %v149, 1
    %v151 = vsel %vm150, %v138, %v140
    %v152 = vmax.f32 %v132, %v151
    %153 = vrot.lane.b32.xlu0 %v152, 126
    %v154 = vpop.permute.xlu0 %153
    %155 = vrot.lane.b32.xlu0 %v152, 2
    %v156 = vpop.permute.xlu0 %155
    %157 = vrot.lane.b32.xlu0 %v136, 126
    %v158 = vpop.permute.xlu0 %157
    %v159 = vxor.u32 %v136, 2
    %vm160 = vcmp.eq.s32.totalorder %v158, %v159
    %v161 = vsel %vm160, 1, 0
    %v162 = vlaneseq
    %v163 = vshrl.u32 %v162, 7
    %v164 = vsub.s32 0, %v163
    %v165 = vrot.slane %v161, %v164
    %vm166 = vcmp.eq.s32.totalorder %v165, 1
    %v167 = vsel %vm166, %v154, %v156
    %v168 = vmax.f32 %v152, %v167
    %169 = vrot.lane.b32.xlu0 %v168, 124
    %v170 = vpop.permute.xlu0 %169
    %171 = vrot.lane.b32.xlu0 %v168, 4
    %v172 = vpop.permute.xlu0 %171
    %173 = vrot.lane.b32.xlu0 %v136, 124
    %v174 = vpop.permute.xlu0 %173
    %v175 = vxor.u32 %v136, 4
    %vm176 = vcmp.eq.s32.totalorder %v174, %v175
    %v177 = vsel %vm176, 1, 0
    %v178 = vlaneseq
    %v179 = vshrl.u32 %v178, 7
    %v180 = vsub.s32 0, %v179
    %v181 = vrot.slane %v177, %v180
    %vm182 = vcmp.eq.s32.totalorder %v181, 1
    %v183 = vsel %vm182, %v170, %v172
    %v184 = vmax.f32 %v168, %v183
    %185 = vrot.lane.b32.xlu0 %v184, 120
    %v186 = vpop.permute.xlu0 %185
    %187 = vrot.lane.b32.xlu0 %v184, 8
    %v188 = vpop.permute.xlu0 %187
    %189 = vrot.lane.b32.xlu0 %v136, 120
    %v190 = vpop.permute.xlu0 %189
    %v191 = vxor.u32 %v136, 8
    %vm192 = vcmp.eq.s32.totalorder %v190, %v191
    %v193 = vsel %vm192, 1, 0
    %v194 = vlaneseq
    %v195 = vshrl.u32 %v194, 7
    %v196 = vsub.s32 0, %v195
    %v197 = vrot.slane %v193, %v196
    %vm198 = vcmp.eq.s32.totalorder %v197, 1
    %v199 = vsel %vm198, %v186, %v188
    %v200 = vmax.f32 %v184, %v199
    %201 = vrot.lane.b32.xlu0 %v200, 112
    %v202 = vpop.permute.xlu0 %201
    %203 = vrot.lane.b32.xlu0 %v200, 16
    %v204 = vpop.permute.xlu0 %203
    %205 = vrot.lane.b32.xlu0 %v136, 112
    %v206 = vpop.permute.xlu0 %205
    %v207 = vxor.u32 %v136, 16
    %vm208 = vcmp.eq.s32.totalorder %v206, %v207
    %v209 = vsel %vm208, 1, 0
    %v210 = vlaneseq
    %v211 = vshrl.u32 %v210, 7
    %v212 = vsub.s32 0, %v211
    %v213 = vrot.slane %v209, %v212
    %vm214 = vcmp.eq.s32.totalorder %v213, 1
    %v215 = vsel %vm214, %v202, %v204
    %v216 = vmax.f32 %v200, %v215
    %v217 = vsub.f32 %v132, %v216
    %v218 = vmul.f32 %v217, 1.442695
    %v219 = vpow.pop %v218
    %220 = vrot.lane.b32.xlu0 %v219, 127
    %v221 = vpop.permute.xlu0 %220
    %222 = vrot.lane.b32.xlu0 %v219, 1
    %v223 = vpop.permute.xlu0 %222
    %v224 = vsel %vm150, %v221, %v223
    %v225 = vadd.f32 %v219, %v224
    %226 = vrot.lane.b32.xlu0 %v225, 126
    %v227 = vpop.permute.xlu0 %226
    %228 = vrot.lane.b32.xlu0 %v225, 2
    %v229 = vpop.permute.xlu0 %228
    %v230 = vsel %vm166, %v227, %v229
    %v231 = vadd.f32 %v225, %v230
    %232 = vrot.lane.b32.xlu0 %v231, 124
    %v233 = vpop.permute.xlu0 %232
    %234 = vrot.lane.b32.xlu0 %v231, 4
    %v235 = vpop.permute.xlu0 %234
    %v236 = vsel %vm182, %v233, %v235
    %v237 = vadd.f32 %v231, %v236
    %238 = vrot.lane.b32.xlu0 %v237, 120
    %v239 = vpop.permute.xlu0 %238
    %240 = vrot.lane.b32.xlu0 %v237, 8
    %v241 = vpop.permute.xlu0 %240
    %v242 = vsel %vm198, %v239, %v241
    %v243 = vadd.f32 %v237, %v242
    %244 = vrot.lane.b32.xlu0 %v243, 112
    %v245 = vpop.permute.xlu0 %244
    %246 = vrot.lane.b32.xlu0 %v243, 16
    %v247 = vpop.permute.xlu0 %246
    %v248 = vsel %vm214, %v245, %v247
    %v249 = vadd.f32 %v243, %v248
    %v250 = vrcp.pop %v249
    %v251 = vmul.f32 %v219, %v250
    %v252 = vmul.f32 %v41, %v251
    %253 = vst [vmem:[#allocation7] sm:$0xff] %v252
    // Predicated region
    $region22: #{tpu_custom_call.1} parent=1 // pred_check
      _
    $region23: #{tpu_custom_call.1} parent=1 // pred_check_branch
      %255 = sbr.rel (0) target = $region25
    $region24: #{tpu_custom_call.1} parent=1 // pred_region
      %s257 = ssub.s32 128, 128
      %258 = vsyncadd [#allocation4], %s257
      %s260 = sshll.u32 [#allocation7], 4
      %s261 = int_to_ptr.vmem [resolvable:$true] %s260
      %263 = dma.vmem_to_hbm [thread:$0]  %s261, 128, %s3, [#allocation4]
    $region25: #{tpu_custom_call.1} parent=1 // pred_fallthru
      _
    // Predicated region
    $region26: #{tpu_custom_call.1} parent=1 // pred_check
      _
    $region27: #{tpu_custom_call.1} parent=1 // pred_check_branch
      %265 = sbr.rel (0) target = $region29
    $region28: #{tpu_custom_call.1} parent=1 // pred_region
      %266 = dma.done [#allocation4], 128
    $region29: #{tpu_custom_call.1} parent=1 // pred_fallthru
      _
    %267 = vsyncpa [#allocation3], 1
    %268 = vsyncpa [#allocation6], 1
    %269 = vsyncpa [#allocation4], 1

</llo_original>
